<compile_context>
chip_gen: v5e
topology: v5e:2x2
jax: 0.10.0
libtpu: 0.0.40
codegen_flags: <defaults>
</compile_context>

<pallas_src>
import jax
import jax.numpy as jnp
from jax.experimental import pallas as pl
from jax.experimental.pallas import tpu as pltpu


def _mean_pool_kernel(m_ref, x_ref, o_ref):
    # m_ref: (TB, 1, S)   lane-dense attention mask for TB batch rows
    # x_ref: (TB, S, TH)  hidden-state tile for the same rows
    # o_ref: (TB, TH)     pooled output tile
    x = x_ref[...].astype(jnp.float32)
    m = m_ref[...].astype(jnp.float32)

    # Masked sum over the sequence axis as a batched matmul (MXU).
    summed = jnp.einsum(
        "bks,bsh->bkh", m, x, preferred_element_type=jnp.float32
    )  # (TB, 1, TH)

    # clamp(sum(mask), 1e-9); identical for every hidden dim.
    denom = jnp.maximum(jnp.sum(m, axis=2, keepdims=True), 1e-9)  # (TB, 1, 1)

    o_ref[...] = (summed / denom)[:, 0, :].astype(o_ref.dtype)


def mean_pooling(last_hidden_state, attention_mask, *, tile_budget_bytes=4 << 20):
    """Pallas masked mean pooling.

    last_hidden_state: [B, S, H] float (f32 or bf16 -- streamed as-is)
    attention_mask:    [B, S]    any numeric dtype
    returns:           [B, H]    float32
    """
    B, S, H = last_hidden_state.shape
    x_dtype = last_hidden_state.dtype
    itemsize = jnp.dtype(x_dtype).itemsize

    # Batch rows per grid step.
    TB = B if B < 8 else 8
    Bp = ((B + TB - 1) // TB) * TB

    # Hidden tile: lane-dense multiple of 128, sized so one double-buffered
    # x tile stays under the budget (fits default scoped VMEM on v5e/v6e/v7x).
    Hp128 = ((H + 127) // 128) * 128
    max_th = max(128, (tile_budget_bytes // max(1, TB * S * itemsize)) // 128 * 128)
    TH = min(Hp128, max_th)
    Hp = ((Hp128 + TH - 1) // TH) * TH

    x = last_hidden_state
    if Bp != B or Hp != H:
        x = jnp.pad(x, ((0, Bp - B), (0, 0), (0, Hp - H)))
    m = attention_mask
    if Bp != B:
        m = jnp.pad(m, ((0, Bp - B), (0, 0)))
    m3 = m.reshape(Bp, 1, S)  # lane-dense mask

    grid = (Bp // TB, Hp // TH)

    # Explicit VMEM budget: double-buffered inputs + output + headroom.
    x_tile_bytes = TB * S * TH * itemsize
    m_tile_bytes = TB * S * jnp.dtype(m3.dtype).itemsize
    o_tile_bytes = TB * TH * 4
    vmem_limit = int(
        min(
            64 << 20,  # stay inside v7x physical VMEM
            max(16 << 20, 2 * (x_tile_bytes + m_tile_bytes + o_tile_bytes) + (4 << 20)),
        )
    )

    out = pl.pallas_call(
        _mean_pool_kernel,
        out_shape=jax.ShapeDtypeStruct((Bp, Hp), jnp.float32),
        grid_spec=pltpu.PrefetchScalarGridSpec(
            num_scalar_prefetch=0,
            grid=grid,
            in_specs=[
                pl.BlockSpec((TB, 1, S), lambda i, j: (i, 0, 0)),
                pl.BlockSpec((TB, S, TH), lambda i, j: (i, 0, j)),
            ],
            out_specs=pl.BlockSpec((TB, TH), lambda i, j: (i, j)),
        ),
        compiler_params=pltpu.CompilerParams(
            dimension_semantics=("parallel", "parallel"),
            vmem_limit_bytes=vmem_limit,
        ),
    )(m3, x)

    return out[:B, :H]


def _reference(last_hidden_state, attention_mask):
    # Pure-JAX reference mirroring the PyTorch forward.
    m = attention_mask[..., None].astype(jnp.float32)
    summed = jnp.sum(last_hidden_state.astype(jnp.float32) * m, axis=1)
    denom = jnp.maximum(jnp.sum(m, axis=1), 1e-9)
    return summed / denom


if __name__ == "__main__":
    key = jax.random.PRNGKey(0)
    k1, k2, k3, k4 = jax.random.split(key, 4)

    # Small demo shape consistent with the module.
    B, S, H = 2, 8, 32
    last_hidden_state = jax.random.normal(k1, (B, S, H), dtype=jnp.float32)
    attention_mask = (jax.random.uniform(k2, (B, S)) > 0.3).astype(jnp.int32)

    out = mean_pooling(last_hidden_state, attention_mask)
    jax.block_until_ready(out)
    ref = _reference(last_hidden_state, attention_mask)
    assert out.shape == (B, H)
    assert jnp.allclose(out, ref, atol=1e-5, rtol=1e-5), "f32 mismatch vs reference"

    # Second check: bf16 hidden states streamed as-is, multi-block grid.
    B2, S2, H2 = 12, 64, 384
    hs2 = jax.random.normal(k3, (B2, S2, H2), dtype=jnp.bfloat16)
    am2 = (jax.random.uniform(k4, (B2, S2)) > 0.4).astype(jnp.int32)
    # Guarantee at least one valid token per row (matches typical inputs).
    am2 = am2.at[:, 0].set(1)

    out2 = mean_pooling(hs2, am2)
    jax.block_until_ready(out2)
    ref2 = _reference(hs2, am2)
    assert out2.shape == (B2, H2)
    assert jnp.allclose(out2, ref2, atol=1e-3, rtol=1e-3), "bf16 mismatch vs reference"

    print("KERNEL_OK")
</pallas_src>

<mosaic_0001>
module attributes {stable_mosaic.version = 11 : i64} {
  func.func @_mean_pool_kernel(%arg0: i32, %arg1: i32, %arg2: memref<2x1x8xi32, #tpu.memory_space<vmem>>, %arg3: memref<2x8x128xf32, #tpu.memory_space<vmem>>, %arg4: memref<2x128xf32, #tpu.memory_space<vmem>>) attributes {dimension_semantics = [#tpu.dimension_semantics<parallel>, #tpu.dimension_semantics<parallel>], iteration_bounds = array<i64: 1, 1>, scalar_prefetch = 0 : i64, scratch_operands = 0 : i64, tpu.core_type = #tpu.core_type<tc>, window_params = [{transform_indices = @transform_0, window_bounds = array<i64: 2, 1, 8>}, {transform_indices = @transform_1, window_bounds = array<i64: 2, 8, 128>}, {transform_indices = @transform_2, window_bounds = array<i64: 2, 128>}]} {
    %c0 = arith.constant 0 : index
    %c0_0 = arith.constant 0 : index
    %c0_1 = arith.constant 0 : index
    %0 = vector.load %arg3[%c0, %c0_0, %c0_1] : memref<2x8x128xf32, #tpu.memory_space<vmem>>, vector<2x8x128xf32>
    %c0_2 = arith.constant 0 : index
    %c0_3 = arith.constant 0 : index
    %c0_4 = arith.constant 0 : index
    %1 = vector.load %arg2[%c0_2, %c0_3, %c0_4] : memref<2x1x8xi32, #tpu.memory_space<vmem>>, vector<2x1x8xi32>
    %2 = arith.sitofp %1 : vector<2x1x8xi32> to vector<2x1x8xf32>
    "tpu.trace_start"() <{level = 10 : i32, message = "bks,bsh->bkh"}> : () -> ()
    %cst = arith.constant dense<0.000000e+00> : vector<2x1x128xf32>
    %3 = tpu.matmul %2, %0, %cst {dimension_numbers = #tpu.dot_dimension_numbers<[2], [1], [1], [2], [0, 0, 0, 1, 1, 2], [0], [0]>} : vector<2x1x8xf32>, vector<2x8x128xf32>, vector<2x1x128xf32> -> vector<2x1x128xf32>
    "tpu.trace_stop"() : () -> ()
    %cst_5 = arith.constant dense<0.000000e+00> : vector<2x1xf32>
    %4 = vector.multi_reduction <add>, %2, %cst_5 [2] : vector<2x1x8xf32> to vector<2x1xf32>
    %5 = vector.shape_cast %4 : vector<2x1xf32> to vector<2x1x1xf32>
    %cst_6 = arith.constant 9.99999971E-10 : f32
    %6 = vector.broadcast %cst_6 : f32 to vector<2x1x1xf32>
    %7 = arith.maximumf %5, %6 : vector<2x1x1xf32>
    %8 = vector.broadcast %7 : vector<2x1x1xf32> to vector<2x1x128xf32>
    %9 = arith.divf %3, %8 : vector<2x1x128xf32>
    %10 = vector.shape_cast %9 : vector<2x1x128xf32> to vector<2x128xf32>
    %c0_7 = arith.constant 0 : index
    %c0_8 = arith.constant 0 : index
    %11 = vector.load %arg4[%c0_7, %c0_8] : memref<2x128xf32, #tpu.memory_space<vmem>>, vector<2x128xf32>
    tpu.vector_store %arg4[%c0_7, %c0_8], %10 {strides = array<i32>} : memref<2x128xf32, #tpu.memory_space<vmem>>, vector<2x128xf32>,
    return
  }
  func.func @transform_0(%arg0: i32, %arg1: i32) -> (i32, i32, i32) {
    %c0_i32 = arith.constant 0 : i32
    %c0_i32_0 = arith.constant 0 : i32
    %c0_i32_1 = arith.constant 0 : i32
    return %arg0, %c0_i32, %c0_i32_0 : i32, i32, i32
  }
  func.func @transform_1(%arg0: i32, %arg1: i32) -> (i32, i32, i32) {
    %c0_i32 = arith.constant 0 : i32
    %c0_i32_0 = arith.constant 0 : i32
    return %arg0, %c0_i32, %arg1 : i32, i32, i32
  }
  func.func @transform_2(%arg0: i32, %arg1: i32) -> (i32, i32) {
    %c0_i32 = arith.constant 0 : i32
    return %arg0, %arg1 : i32, i32
  }
}

</mosaic_0001>

<llo_original>
// kernel: tpu_custom_call.1
$region0: #{tpu_custom_call.1}
  #allocation0 [shape = 'u32[]', space=smem, size = 0x4, offset = 0x4, fixed_abs, tag = 'smem constant byte address 0x4 - core index']
  #allocation1 [shape = 'u32[72,128]{1,0:T(1,128)}', space=vmem, size = 0x9000, scoped, tag = 'internal scratch']
  %s0 = inlined_call_operand.hbm [shape: s32[2,1,8], index: 0, kind: input, shape index: {}]
  %s1 = inlined_call_operand.hbm [shape: f32[2,8,128], index: 1, kind: input, shape index: {}]
  %s2 = inlined_call_operand.hbm [shape: f32[2,128], index: 2, kind: output, shape index: {}]
  %s3 = sld [smem:[#allocation0]]
  $region26: #{tpu_custom_call.1} parent=0
    _
  %s5 = ssub.s32 1, %s3
  %s6 = scalar_select 0, %s5, %s3
  $region1: #{tpu_custom_call.1} parent=0
    #allocation2 [shape = 'u8[1024]{0}', space=vmem, size = 0x400, scoped, tag = 'input window, operand 0, single buffered']
    #allocation3 [shape = 's32[1]{0}', space=sflag, size = 0x4, scoped, tag = 'scoped memory for tpu_custom_call.1']
    #allocation4 [shape = 's32[1]{0}', space=sflag, size = 0x4, scoped, tag = 'scoped memory for tpu_custom_call.1']
    #allocation5 [shape = 'u8[8192]{0}', space=vmem, size = 0x2000, scoped, tag = 'input window, operand 1, single buffered']
    #allocation6 [shape = 's32[1]{0}', space=sflag, size = 0x4, scoped, tag = 'scoped memory for tpu_custom_call.1']
    #allocation7 [shape = 'u8[1024]{0}', space=vmem, size = 0x400, scoped, tag = 'output window, operand 0, single buffered']
    %7 = vsyncpa [#allocation3], 0
    %8 = vsyncpa [#allocation6], 0
    %9 = vsyncpa [#allocation4], 0
    // Predicated region
    $region2: #{tpu_custom_call.1} parent=1 // pred_check
      _
    $region3: #{tpu_custom_call.1} parent=1 // pred_check_branch
      %11 = sbr.rel (0) target = $region5
    $region4: #{tpu_custom_call.1} parent=1 // pred_region
      %13 = vsyncadd [#allocation3], 0
      %s14 = sshll.u32 %s0, 4
      %s15 = int_to_ptr.hbm [resolvable:$true] %s14
      %s16 = sshll.u32 [#allocation2], 4
      %s17 = int_to_ptr.vmem [resolvable:$true] %s16
      %22 = dma.hbm_to_vmem [thread:$0]  %s15, 32, %s17, [#allocation3], 16, 16, 1
    $region5: #{tpu_custom_call.1} parent=1 // pred_fallthru
      _
    // Predicated region
    $region6: #{tpu_custom_call.1} parent=1 // pred_check
      _
    $region7: #{tpu_custom_call.1} parent=1 // pred_check_branch
      %24 = sbr.rel (0) target = $region9
    $region8: #{tpu_custom_call.1} parent=1 // pred_region
      %26 = vsyncadd [#allocation6], 0
      %s27 = sshll.u32 %s1, 4
      %s28 = int_to_ptr.hbm [resolvable:$true] %s27
      %s29 = sshll.u32 [#allocation5], 4
      %s30 = int_to_ptr.vmem [resolvable:$true] %s29
      %35 = dma.hbm_to_vmem [thread:$0]  %s28, 256, %s30, [#allocation6], 128, 128, 8
    $region9: #{tpu_custom_call.1} parent=1 // pred_fallthru
      _
    // Predicated region
    $region10: #{tpu_custom_call.1} parent=1 // pred_check
      _
    $region11: #{tpu_custom_call.1} parent=1 // pred_check_branch
      %37 = sbr.rel (0) target = $region13
    $region12: #{tpu_custom_call.1} parent=1 // pred_region
      %39 = dma.done [#allocation3], 32
    $region13: #{tpu_custom_call.1} parent=1 // pred_fallthru
      _
    // Predicated region
    $region14: #{tpu_custom_call.1} parent=1 // pred_check
      _
    $region15: #{tpu_custom_call.1} parent=1 // pred_check_branch
      %41 = sbr.rel (0) target = $region17
    $region16: #{tpu_custom_call.1} parent=1 // pred_region
      %43 = dma.done [#allocation6], 256
    $region17: #{tpu_custom_call.1} parent=1 // pred_fallthru
      _
    %v44 = vld [vmem:[#allocation5] sm:$0xff]
    %v45 = vld [vmem:[#allocation5 + $0x8] sm:$0xff]
    %v46 = vld [vmem:[#allocation2] sm:$0x1]
    %v47 = vld [vmem:[#allocation2 + $0x1] sm:$0x1]
    %v48 = vcvt.s32.f32 %v46
    %v49 = vcvt.s32.f32 %v47
    %vm50 = vcmask 64512
    %v52 = vsel %vm50, %v48, 0
    %54 = vmatpush.msra.mxu0 0.0
    %55 = vmatpush.msra.mxu0 0.0
    %56 = vmatpush.msra.mxu0 0.0
    %57 = vmatpush.msra.mxu0 0.0
    %58 = vmatpush.msra.mxu0 0.0
    %59 = vmatpush.msra.mxu0 0.0
    %60 = vmatpush.msra.mxu0 0.0
    %61 = vmatpush.msra.mxu0 0.0
    %62 = vmatpush.msra.mxu0 0.0
    %63 = vmatpush.msra.mxu0 0.0
    %64 = vmatpush.msra.mxu0 0.0
    %65 = vmatpush.msra.mxu0 0.0
    %66 = vmatpush.msra.mxu0 0.0
    %67 = vmatpush.msra.mxu0 0.0
    %68 = vmatpush.msra.mxu0 0.0
    %69 = vmatpush.msra.mxu0 %v44
    %70 = vmatmul.f32.gmra.mxu0 %v52
    %v71 = vpop.f32.mrf.mxu0
    %v72 = vadd.f32 0.0, %v71
    %73 = vdwg.mxu0
    %v75 = vsel %vm50, %v49, 0
    %77 = vmatpush.msra.mxu0 0.0
    %78 = vmatpush.msra.mxu0 0.0
    %79 = vmatpush.msra.mxu0 0.0
    %80 = vmatpush.msra.mxu0 0.0
    %81 = vmatpush.msra.mxu0 0.0
    %82 = vmatpush.msra.mxu0 0.0
    %83 = vmatpush.msra.mxu0 0.0
    %84 = vmatpush.msra.mxu0 0.0
    %85 = vmatpush.msra.mxu0 0.0
    %86 = vmatpush.msra.mxu0 0.0
    %87 = vmatpush.msra.mxu0 0.0
    %88 = vmatpush.msra.mxu0 0.0
    %89 = vmatpush.msra.mxu0 0.0
    %90 = vmatpush.msra.mxu0 0.0
    %91 = vmatpush.msra.mxu0 0.0
    %92 = vmatpush.msra.mxu0 %v45
    %93 = vmatmul.f32.gmra.mxu0 %v75
    %v94 = vpop.f32.mrf.mxu0
    %v95 = vadd.f32 0.0, %v94
    %96 = vdwg.mxu0
    %vm97 = vcmask 57344
    %v98 = vsel %vm97, %v48, 0.0
    %99 = vadd.xlane.f32.xlu0 %v98
    %v100 = vpop.xlane.xlu0 %99
    %v101 = vsel %vm97, %v49, 0.0
    %102 = vadd.xlane.f32.xlu0 %v101
    %v103 = vpop.xlane.xlu0 %102
    %v104 = vmax.f32 %v100, 1e-09
    %v105 = vmax.f32 %v103, 1e-09
    %v106 = vrcp.pop %v104
    %v107 = vmul.f32 %v104, %v106
    %v108 = vsub.f32 1.0, %v107
    %v109 = vmul.f32 %v106, %v108
    %v110 = vadd.f32 %v106, %v109
    %vm111 = vweird.f32 %v104
    %vm112 = vweird.f32 %v106
    %vm113 = vmor %vm111, %vm112
    %v114 = vsel %vm113, %v106, %v110
    %v115 = vand.u32 2147483647, %v104
    %vm116 = vcmp.eq.f32.partialorder %v115, 8.507059e+37
    %v117 = vand.u32 %v104, 2147483648
    %v118 = vor.u32 1.1754944e-38, %v117
    %v119 = vsel %vm116, %v118, %v114
    %v120 = vmul.f32 %v72, %v119
    %v121 = vrcp.pop %v105
    %v122 = vmul.f32 %v105, %v121
    %v123 = vsub.f32 1.0, %v122
    %v124 = vmul.f32 %v121, %v123
    %v125 = vadd.f32 %v121, %v124
    %vm126 = vweird.f32 %v105
    %vm127 = vweird.f32 %v121
    %vm128 = vmor %vm126, %vm127
    %v129 = vsel %vm128, %v121, %v125
    %v130 = vand.u32 2147483647, %v105
    %vm131 = vcmp.eq.f32.partialorder %v130, 8.507059e+37
    %v132 = vand.u32 %v105, 2147483648
    %v133 = vor.u32 1.1754944e-38, %v132
    %v134 = vsel %vm131, %v133, %v129
    %v135 = vmul.f32 %v95, %v134
    %v138 = vrot.slane %v135, 7
    %vm139 = vcmask 1041409
    %v140 = vsel %vm139, %v138, %v120
    %142 = vst [vmem:[#allocation7] sm:$0x3] %v140
    // Predicated region
    $region18: #{tpu_custom_call.1} parent=1 // pred_check
      _
    $region19: #{tpu_custom_call.1} parent=1 // pred_check_branch
      %144 = sbr.rel (0) target = $region21
    $region20: #{tpu_custom_call.1} parent=1 // pred_region
      %146 = vsyncadd [#allocation4], 0
      %s148 = sshll.u32 [#allocation7], 4
      %s149 = int_to_ptr.vmem [resolvable:$true] %s148
      %s150 = sshll.u32 %s2, 4
      %s151 = int_to_ptr.hbm [resolvable:$true] %s150
      %153 = dma.vmem_to_hbm [thread:$0]  %s149, 32, %s151, [#allocation4]
    $region21: #{tpu_custom_call.1} parent=1 // pred_fallthru
      _
    // Predicated region
    $region22: #{tpu_custom_call.1} parent=1 // pred_check
      _
    $region23: #{tpu_custom_call.1} parent=1 // pred_check_branch
      %155 = sbr.rel (0) target = $region25
    $region24: #{tpu_custom_call.1} parent=1 // pred_region
      %157 = dma.done [#allocation4], 32
    $region25: #{tpu_custom_call.1} parent=1 // pred_fallthru
      _
    %158 = vsyncpa [#allocation3], 1
    %159 = vsyncpa [#allocation6], 1
    %160 = vsyncpa [#allocation4], 1

</llo_original>
